<compile_context>
chip_gen: v7x
topology: tpu7x:2x2x1
jax: 0.10.0
libtpu: 0.0.40
codegen_flags: <defaults>
</compile_context>

<pallas_src>
import numpy as np
import jax
import jax.numpy as jnp
from jax.experimental import pallas as pl
from jax.experimental.pallas import tpu as pltpu


# ----------------------------------------------------------------------------
# Fused Pallas kernel
# ----------------------------------------------------------------------------
def _basic_block_kernel(x_ref, w1_ref, s1_ref, b1_ref, w2_ref, s2_ref, b2_ref,
                        o_ref, xpad_ref, hpad_ref):
    """Fused: conv3x3+BN1+ReLU -> conv3x3+BN2 -> +skip -> ReLU.

    x_ref:             (1, H, W*C)       float32    (lane-dense activations)
    w1_ref, w2_ref:    (3, (W+2)*C, W*C) bfloat16   (block-banded weights)
    s*_ref, b*_ref:    (1, W*C)          float32    (folded BN, tiled over W)
    o_ref:             (1, H, W*C)       float32
    xpad_ref, hpad_ref:((H+2), (W+2)*C)  float32 VMEM scratch (halo-padded)
    """
    H = o_ref.shape[1]
    WC = o_ref.shape[2]                 # W * C      (128 lanes here)
    WCp = xpad_ref.shape[1]             # (W+2) * C  (halo-padded width)
    C = (WCp - WC) // 2                 # channels == one-pixel halo offset

    def conv3x3_banded(src_pad_ref, w_ref):
        # sum over the 3 kernel rows:  (H, WCp)_bf16 @ (WCp, WC)_bf16 -> f32
        acc = jnp.dot(src_pad_ref[pl.ds(0, H), :].astype(jnp.bfloat16),
                      w_ref[0], preferred_element_type=jnp.float32)
        acc = acc + jnp.dot(src_pad_ref[pl.ds(1, H), :].astype(jnp.bfloat16),
                            w_ref[1], preferred_element_type=jnp.float32)
        acc = acc + jnp.dot(src_pad_ref[pl.ds(2, H), :].astype(jnp.bfloat16),
                            w_ref[2], preferred_element_type=jnp.float32)
        return acc                      # (H, WC) float32

    x = x_ref[0]                        # (H, WC) float32 — also the skip path

    # SAME-padding done on-chip into VMEM scratch (no host jnp.pad HBM pass).
    xpad_ref[...] = jnp.zeros_like(xpad_ref)
    xpad_ref[pl.ds(1, H), pl.ds(C, WC)] = x

    # conv1 + folded BN1 + ReLU   (intermediate h never leaves VMEM).
    h = conv3x3_banded(xpad_ref, w1_ref) * s1_ref[0] + b1_ref[0]
    h = jnp.maximum(h, 0.0)

    hpad_ref[...] = jnp.zeros_like(hpad_ref)
    hpad_ref[pl.ds(1, H), pl.ds(C, WC)] = h

    # conv2 + folded BN2 + residual add (f32 skip) + ReLU, lane-dense store.
    y = conv3x3_banded(hpad_ref, w2_ref) * s2_ref[0] + b2_ref[0]
    o_ref[0] = jnp.maximum(y + x, 0.0).astype(o_ref.dtype)


# ----------------------------------------------------------------------------
# Wrapper
# ----------------------------------------------------------------------------
def basic_block_forward(x_nhwc, params):
    """BasicBlock forward.  x_nhwc: (N, H, W, C) float32, NHWC (TPU-native)."""
    N, H, W, C = x_nhwc.shape
    WC, WCp = W * C, (W + 2) * C
    x2d = x_nhwc.reshape(N, H, WC)        # lane-dense activation layout

    out2d = pl.pallas_call(
        _basic_block_kernel,
        out_shape=jax.ShapeDtypeStruct((N, H, WC), jnp.float32),
        grid_spec=pltpu.PrefetchScalarGridSpec(
            num_scalar_prefetch=0,
            grid=(N,),
            in_specs=[
                pl.BlockSpec((1, H, WC), lambda n: (n, 0, 0)),     # x
                pl.BlockSpec((3, WCp, WC), lambda n: (0, 0, 0)),   # w1 (banded)
                pl.BlockSpec((1, WC), lambda n: (0, 0)),           # s1
                pl.BlockSpec((1, WC), lambda n: (0, 0)),           # b1
                pl.BlockSpec((3, WCp, WC), lambda n: (0, 0, 0)),   # w2 (banded)
                pl.BlockSpec((1, WC), lambda n: (0, 0)),           # s2
                pl.BlockSpec((1, WC), lambda n: (0, 0)),           # b2
            ],
            out_specs=pl.BlockSpec((1, H, WC), lambda n: (n, 0, 0)),
            scratch_shapes=[
                pltpu.VMEM((H + 2, WCp), jnp.float32),   # halo-padded x
                pltpu.VMEM((H + 2, WCp), jnp.float32),   # halo-padded h
            ]),
        compiler_params=pltpu.CompilerParams(
            dimension_semantics=("parallel",)),
    )(x2d, params["w1b"], params["s1"], params["b1"],
      params["w2b"], params["s2"], params["b2"])

    return out2d.reshape(N, H, W, C)


# ----------------------------------------------------------------------------
# Parameter construction (host-side, one-time)
# ----------------------------------------------------------------------------
def ternarize(w):
    """TernaryConv2d quantization: {-1, 0, +1}, thr = 0.7 * mean(|w|)."""
    thr = 0.7 * jnp.mean(jnp.abs(w))
    return jnp.where(w > thr, 1.0,
                     jnp.where(w < -thr, -1.0, 0.0)).astype(jnp.float32)


def fold_bn(gamma, beta, mean, var, eps=1e-5):
    scale = gamma / jnp.sqrt(var + eps)
    bias = beta - mean * scale
    return scale, bias                      # per-channel (C,)


def build_banded_weight(w_hwio, W):
    """(3,3,Cin,Cout) HWIO -> (3, (W+2)*Cin, W*Cout) block-banded bf16 matrices.

    wb[kh, (w+kw)*Cin + ci, w*Cout + co] = w_hwio[kh, kw, ci, co]
    so that  out2d[h] = sum_kh  xpad2d[h+kh] @ wb[kh]  reproduces a stride-1
    SAME 3x3 conv on the lane-flattened (rows, W*Cin) activation layout.
    (Ternary values {-1,0,+1} are exact in bf16.)
    """
    w_np = np.asarray(w_hwio, dtype=np.float32)
    _, _, Cin, Cout = w_np.shape
    wb = np.zeros((3, (W + 2) * Cin, W * Cout), dtype=np.float32)
    for kh in range(3):
        for w in range(W):
            for kw in range(3):
                wb[kh,
                   (w + kw) * Cin:(w + kw + 1) * Cin,
                   w * Cout:(w + 1) * Cout] = w_np[kh, kw]
    return jnp.asarray(wb, dtype=jnp.bfloat16)


# ----------------------------------------------------------------------------
# Plain-JAX reference (full f32) for the correctness check
# ----------------------------------------------------------------------------
def _ref_conv(x_nhwc, w_hwio):
    return jax.lax.conv_general_dilated(
        x_nhwc, w_hwio, window_strides=(1, 1), padding="SAME",
        dimension_numbers=("NHWC", "HWIO", "NHWC"),
        precision=jax.lax.Precision.HIGHEST)


def basic_block_reference(x_nhwc, w1, w2, s1, b1, s2, b2):
    h = jnp.maximum(_ref_conv(x_nhwc, w1) * s1 + b1, 0.0)
    y = _ref_conv(h, w2) * s2 + b2
    return jnp.maximum(y + x_nhwc, 0.0)


# ----------------------------------------------------------------------------
if __name__ == "__main__":
    key = jax.random.PRNGKey(0)
    N, C, H, W = 2, 8, 16, 16          # inplanes == planes; W*C = 128 lanes
    planes = C

    (k_x, k_w1, k_w2, k_g1, k_b1, k_m1, k_v1,
     k_g2, k_b2, k_m2, k_v2) = jax.random.split(key, 11)

    # Module input is NCHW; transpose ONCE at the model boundary (the block
    # itself stays NHWC / lane-flattened end-to-end).
    x_nchw = jax.random.normal(k_x, (N, C, H, W), dtype=jnp.float32)
    x_nhwc = jnp.transpose(x_nchw, (0, 2, 3, 1))

    # TernaryConv2d weights (built directly in HWIO).
    w1_hwio = ternarize(jax.random.normal(k_w1, (3, 3, C, planes), jnp.float32))
    w2_hwio = ternarize(jax.random.normal(k_w2, (3, 3, planes, planes),
                                          jnp.float32))

    # BatchNorm (inference form) parameters, deterministic synthetic values.
    g1 = 1.0 + 0.1 * jax.random.normal(k_g1, (planes,), jnp.float32)
    be1 = 0.1 * jax.random.normal(k_b1, (planes,), jnp.float32)
    m1 = 0.1 * jax.random.normal(k_m1, (planes,), jnp.float32)
    v1 = jnp.abs(1.0 + 0.1 * jax.random.normal(k_v1, (planes,), jnp.float32))
    g2 = 1.0 + 0.1 * jax.random.normal(k_g2, (planes,), jnp.float32)
    be2 = 0.1 * jax.random.normal(k_b2, (planes,), jnp.float32)
    m2 = 0.1 * jax.random.normal(k_m2, (planes,), jnp.float32)
    v2 = jnp.abs(1.0 + 0.1 * jax.random.normal(k_v2, (planes,), jnp.float32))

    s1c, b1c = fold_bn(g1, be1, m1, v1)
    s2c, b2c = fold_bn(g2, be2, m2, v2)

    params = {
        "w1b": build_banded_weight(w1_hwio, W),
        "w2b": build_banded_weight(w2_hwio, W),
        # Folded BN, tiled over W so it broadcasts over the (w, c) lane axis.
        "s1": jnp.tile(s1c, W)[None, :].astype(jnp.float32),
        "b1": jnp.tile(b1c, W)[None, :].astype(jnp.float32),
        "s2": jnp.tile(s2c, W)[None, :].astype(jnp.float32),
        "b2": jnp.tile(b2c, W)[None, :].astype(jnp.float32),
    }

    out = jax.block_until_ready(jax.jit(basic_block_forward)(x_nhwc, params))

    # Correctness check vs a full-f32 lax.conv reference.  The kernel feeds the
    # MXU bf16 operands (ternary weights are exact; activations get ~2^-9
    # relative rounding), so compare with a relative tolerance.
    ref = jax.block_until_ready(
        basic_block_reference(x_nhwc, w1_hwio, w2_hwio, s1c, b1c, s2c, b2c))
    rel_err = float(jnp.max(jnp.abs(out - ref)) /
                    jnp.maximum(jnp.max(jnp.abs(ref)), 1.0))
    assert rel_err < 2e-2, f"mismatch vs reference: rel_err={rel_err}"

    print("KERNEL_OK")
</pallas_src>

<mosaic_0001>
module attributes {stable_mosaic.version = 11 : i64} {
  func.func @_basic_block_kernel(%arg0: i32, %arg1: memref<1x16x128xf32, #tpu.memory_space<vmem>>, %arg2: memref<3x144x128xbf16, #tpu.memory_space<vmem>>, %arg3: memref<1x128xf32, #tpu.memory_space<vmem>>, %arg4: memref<1x128xf32, #tpu.memory_space<vmem>>, %arg5: memref<3x144x128xbf16, #tpu.memory_space<vmem>>, %arg6: memref<1x128xf32, #tpu.memory_space<vmem>>, %arg7: memref<1x128xf32, #tpu.memory_space<vmem>>, %arg8: memref<1x16x128xf32, #tpu.memory_space<vmem>>, %arg9: memref<18x144xf32, #tpu.memory_space<vmem>>, %arg10: memref<18x144xf32, #tpu.memory_space<vmem>>) attributes {dimension_semantics = [#tpu.dimension_semantics<parallel>], iteration_bounds = array<i64: 2>, scalar_prefetch = 0 : i64, scratch_operands = 2 : i64, tpu.core_type = #tpu.core_type<tc>, window_params = [{transform_indices = @transform_0, window_bounds = array<i64: 1, 16, 128>}, {pipeline_mode = #tpu.pipeline_mode<synchronous>, transform_indices = @transform_1, window_bounds = array<i64: 3, 144, 128>}, {pipeline_mode = #tpu.pipeline_mode<synchronous>, transform_indices = @transform_2, window_bounds = array<i64: 1, 128>}, {pipeline_mode = #tpu.pipeline_mode<synchronous>, transform_indices = @transform_3, window_bounds = array<i64: 1, 128>}, {pipeline_mode = #tpu.pipeline_mode<synchronous>, transform_indices = @transform_4, window_bounds = array<i64: 3, 144, 128>}, {pipeline_mode = #tpu.pipeline_mode<synchronous>, transform_indices = @transform_5, window_bounds = array<i64: 1, 128>}, {pipeline_mode = #tpu.pipeline_mode<synchronous>, transform_indices = @transform_6, window_bounds = array<i64: 1, 128>}, {transform_indices = @transform_7, window_bounds = array<i64: 1, 16, 128>}]} {
    %c0 = arith.constant 0 : index
    %c0_0 = arith.constant 0 : index
    %c0_1 = arith.constant 0 : index
    %0 = vector.load %arg1[%c0, %c0_0, %c0_1] : memref<1x16x128xf32, #tpu.memory_space<vmem>>, vector<1x16x128xf32>
    %1 = vector.shape_cast %0 : vector<1x16x128xf32> to vector<16x128xf32>
    %cst = arith.constant 0.000000e+00 : f32
    %2 = vector.broadcast %cst : f32 to vector<18x144xf32>
    %c0_2 = arith.constant 0 : index
    %c0_3 = arith.constant 0 : index
    %3 = vector.load %arg9[%c0_2, %c0_3] : memref<18x144xf32, #tpu.memory_space<vmem>>, vector<18x144xf32>
    tpu.vector_store %arg9[%c0_2, %c0_3], %2 {strides = array<i32>} : memref<18x144xf32, #tpu.memory_space<vmem>>, vector<18x144xf32>,
    %c1 = arith.constant 1 : index
    %c8 = arith.constant 8 : index
    %4 = vector.load %arg9[%c1, %c8] : memref<18x144xf32, #tpu.memory_space<vmem>>, vector<16x128xf32>
    tpu.vector_store %arg9[%c1, %c8], %1 {strides = array<i32>} : memref<18x144xf32, #tpu.memory_space<vmem>>, vector<16x128xf32>,
    %c0_4 = arith.constant 0 : index
    %c0_5 = arith.constant 0 : index
    %5 = vector.load %arg9[%c0_4, %c0_5] : memref<18x144xf32, #tpu.memory_space<vmem>>, vector<16x144xf32>
    %6 = arith.truncf %5 : vector<16x144xf32> to vector<16x144xbf16>
    %c0_6 = arith.constant 0 : index
    %c0_7 = arith.constant 0 : index
    %c0_8 = arith.constant 0 : index
    %7 = vector.load %arg2[%c0_6, %c0_7, %c0_8] : memref<3x144x128xbf16, #tpu.memory_space<vmem>>, vector<1x144x128xbf16>
    %8 = vector.shape_cast %7 : vector<1x144x128xbf16> to vector<144x128xbf16>
    %cst_9 = arith.constant dense<0.000000e+00> : vector<16x128xf32>
    %9 = tpu.matmul %6, %8, %cst_9 {dimension_numbers = #tpu.dot_dimension_numbers<[1], [0], [0], [1], [0, 0, 1, 1], [], []>} : vector<16x144xbf16>, vector<144x128xbf16>, vector<16x128xf32> -> vector<16x128xf32>
    %c1_10 = arith.constant 1 : index
    %c0_11 = arith.constant 0 : index
    %10 = vector.load %arg9[%c1_10, %c0_11] : memref<18x144xf32, #tpu.memory_space<vmem>>, vector<16x144xf32>
    %11 = arith.truncf %10 : vector<16x144xf32> to vector<16x144xbf16>
    %c1_12 = arith.constant 1 : index
    %c0_13 = arith.constant 0 : index
    %c0_14 = arith.constant 0 : index
    %12 = vector.load %arg2[%c1_12, %c0_13, %c0_14] : memref<3x144x128xbf16, #tpu.memory_space<vmem>>, vector<1x144x128xbf16>
    %13 = vector.shape_cast %12 : vector<1x144x128xbf16> to vector<144x128xbf16>
    %cst_15 = arith.constant dense<0.000000e+00> : vector<16x128xf32>
    %14 = tpu.matmul %11, %13, %cst_15 {dimension_numbers = #tpu.dot_dimension_numbers<[1], [0], [0], [1], [0, 0, 1, 1], [], []>} : vector<16x144xbf16>, vector<144x128xbf16>, vector<16x128xf32> -> vector<16x128xf32>
    %15 = arith.addf %9, %14 : vector<16x128xf32>
    %c2 = arith.constant 2 : index
    %c0_16 = arith.constant 0 : index
    %16 = vector.load %arg9[%c2, %c0_16] : memref<18x144xf32, #tpu.memory_space<vmem>>, vector<16x144xf32>
    %17 = arith.truncf %16 : vector<16x144xf32> to vector<16x144xbf16>
    %c2_17 = arith.constant 2 : index
    %c0_18 = arith.constant 0 : index
    %c0_19 = arith.constant 0 : index
    %18 = vector.load %arg2[%c2_17, %c0_18, %c0_19] : memref<3x144x128xbf16, #tpu.memory_space<vmem>>, vector<1x144x128xbf16>
    %19 = vector.shape_cast %18 : vector<1x144x128xbf16> to vector<144x128xbf16>
    %cst_20 = arith.constant dense<0.000000e+00> : vector<16x128xf32>
    %20 = tpu.matmul %17, %19, %cst_20 {dimension_numbers = #tpu.dot_dimension_numbers<[1], [0], [0], [1], [0, 0, 1, 1], [], []>} : vector<16x144xbf16>, vector<144x128xbf16>, vector<16x128xf32> -> vector<16x128xf32>
    %21 = arith.addf %15, %20 : vector<16x128xf32>
    %c0_21 = arith.constant 0 : index
    %c0_22 = arith.constant 0 : index
    %22 = vector.load %arg3[%c0_21, %c0_22] : memref<1x128xf32, #tpu.memory_space<vmem>>, vector<1x128xf32>
    %23 = vector.shape_cast %22 : vector<1x128xf32> to vector<128xf32>
    %24 = vector.shape_cast %23 : vector<128xf32> to vector<1x128xf32>
    %25 = vector.broadcast %24 : vector<1x128xf32> to vector<16x128xf32>
    %26 = arith.mulf %21, %25 : vector<16x128xf32>
    %c0_23 = arith.constant 0 : index
    %c0_24 = arith.constant 0 : index
    %27 = vector.load %arg4[%c0_23, %c0_24] : memref<1x128xf32, #tpu.memory_space<vmem>>, vector<1x128xf32>
    %28 = vector.shape_cast %27 : vector<1x128xf32> to vector<128xf32>
    %29 = vector.shape_cast %28 : vector<128xf32> to vector<1x128xf32>
    %30 = vector.broadcast %29 : vector<1x128xf32> to vector<16x128xf32>
    %31 = arith.addf %26, %30 : vector<16x128xf32>
    %cst_25 = arith.constant 0.000000e+00 : f32
    %32 = vector.broadcast %cst_25 : f32 to vector<16x128xf32>
    %33 = arith.maximumf %31, %32 : vector<16x128xf32>
    %cst_26 = arith.constant 0.000000e+00 : f32
    %34 = vector.broadcast %cst_26 : f32 to vector<18x144xf32>
    %c0_27 = arith.constant 0 : index
    %c0_28 = arith.constant 0 : index
    %35 = vector.load %arg10[%c0_27, %c0_28] : memref<18x144xf32, #tpu.memory_space<vmem>>, vector<18x144xf32>
    tpu.vector_store %arg10[%c0_27, %c0_28], %34 {strides = array<i32>} : memref<18x144xf32, #tpu.memory_space<vmem>>, vector<18x144xf32>,
    %c1_29 = arith.constant 1 : index
    %c8_30 = arith.constant 8 : index
    %36 = vector.load %arg10[%c1_29, %c8_30] : memref<18x144xf32, #tpu.memory_space<vmem>>, vector<16x128xf32>
    tpu.vector_store %arg10[%c1_29, %c8_30], %33 {strides = array<i32>} : memref<18x144xf32, #tpu.memory_space<vmem>>, vector<16x128xf32>,
    %c0_31 = arith.constant 0 : index
    %c0_32 = arith.constant 0 : index
    %37 = vector.load %arg10[%c0_31, %c0_32] : memref<18x144xf32, #tpu.memory_space<vmem>>, vector<16x144xf32>
    %38 = arith.truncf %37 : vector<16x144xf32> to vector<16x144xbf16>
    %c0_33 = arith.constant 0 : index
    %c0_34 = arith.constant 0 : index
    %c0_35 = arith.constant 0 : index
    %39 = vector.load %arg5[%c0_33, %c0_34, %c0_35] : memref<3x144x128xbf16, #tpu.memory_space<vmem>>, vector<1x144x128xbf16>
    %40 = vector.shape_cast %39 : vector<1x144x128xbf16> to vector<144x128xbf16>
    %cst_36 = arith.constant dense<0.000000e+00> : vector<16x128xf32>
    %41 = tpu.matmul %38, %40, %cst_36 {dimension_numbers = #tpu.dot_dimension_numbers<[1], [0], [0], [1], [0, 0, 1, 1], [], []>} : vector<16x144xbf16>, vector<144x128xbf16>, vector<16x128xf32> -> vector<16x128xf32>
    %c1_37 = arith.constant 1 : index
    %c0_38 = arith.constant 0 : index
    %42 = vector.load %arg10[%c1_37, %c0_38] : memref<18x144xf32, #tpu.memory_space<vmem>>, vector<16x144xf32>
    %43 = arith.truncf %42 : vector<16x144xf32> to vector<16x144xbf16>
    %c1_39 = arith.constant 1 : index
    %c0_40 = arith.constant 0 : index
    %c0_41 = arith.constant 0 : index
    %44 = vector.load %arg5[%c1_39, %c0_40, %c0_41] : memref<3x144x128xbf16, #tpu.memory_space<vmem>>, vector<1x144x128xbf16>
    %45 = vector.shape_cast %44 : vector<1x144x128xbf16> to vector<144x128xbf16>
    %cst_42 = arith.constant dense<0.000000e+00> : vector<16x128xf32>
    %46 = tpu.matmul %43, %45, %cst_42 {dimension_numbers = #tpu.dot_dimension_numbers<[1], [0], [0], [1], [0, 0, 1, 1], [], []>} : vector<16x144xbf16>, vector<144x128xbf16>, vector<16x128xf32> -> vector<16x128xf32>
    %47 = arith.addf %41, %46 : vector<16x128xf32>
    %c2_43 = arith.constant 2 : index
    %c0_44 = arith.constant 0 : index
    %48 = vector.load %arg10[%c2_43, %c0_44] : memref<18x144xf32, #tpu.memory_space<vmem>>, vector<16x144xf32>
    %49 = arith.truncf %48 : vector<16x144xf32> to vector<16x144xbf16>
    %c2_45 = arith.constant 2 : index
    %c0_46 = arith.constant 0 : index
    %c0_47 = arith.constant 0 : index
    %50 = vector.load %arg5[%c2_45, %c0_46, %c0_47] : memref<3x144x128xbf16, #tpu.memory_space<vmem>>, vector<1x144x128xbf16>
    %51 = vector.shape_cast %50 : vector<1x144x128xbf16> to vector<144x128xbf16>
    %cst_48 = arith.constant dense<0.000000e+00> : vector<16x128xf32>
    %52 = tpu.matmul %49, %51, %cst_48 {dimension_numbers = #tpu.dot_dimension_numbers<[1], [0], [0], [1], [0, 0, 1, 1], [], []>} : vector<16x144xbf16>, vector<144x128xbf16>, vector<16x128xf32> -> vector<16x128xf32>
    %53 = arith.addf %47, %52 : vector<16x128xf32>
    %c0_49 = arith.constant 0 : index
    %c0_50 = arith.constant 0 : index
    %54 = vector.load %arg6[%c0_49, %c0_50] : memref<1x128xf32, #tpu.memory_space<vmem>>, vector<1x128xf32>
    %55 = vector.shape_cast %54 : vector<1x128xf32> to vector<128xf32>
    %56 = vector.shape_cast %55 : vector<128xf32> to vector<1x128xf32>
    %57 = vector.broadcast %56 : vector<1x128xf32> to vector<16x128xf32>
    %58 = arith.mulf %53, %57 : vector<16x128xf32>
    %c0_51 = arith.constant 0 : index
    %c0_52 = arith.constant 0 : index
    %59 = vector.load %arg7[%c0_51, %c0_52] : memref<1x128xf32, #tpu.memory_space<vmem>>, vector<1x128xf32>
    %60 = vector.shape_cast %59 : vector<1x128xf32> to vector<128xf32>
    %61 = vector.shape_cast %60 : vector<128xf32> to vector<1x128xf32>
    %62 = vector.broadcast %61 : vector<1x128xf32> to vector<16x128xf32>
    %63 = arith.addf %58, %62 : vector<16x128xf32>
    %64 = arith.addf %63, %1 : vector<16x128xf32>
    %cst_53 = arith.constant 0.000000e+00 : f32
    %65 = vector.broadcast %cst_53 : f32 to vector<16x128xf32>
    %66 = arith.maximumf %64, %65 : vector<16x128xf32>
    %c0_54 = arith.constant 0 : index
    %c0_55 = arith.constant 0 : index
    %c0_56 = arith.constant 0 : index
    %67 = vector.load %arg8[%c0_54, %c0_55, %c0_56] : memref<1x16x128xf32, #tpu.memory_space<vmem>>, vector<1x16x128xf32>
    %68 = vector.shape_cast %67 : vector<1x16x128xf32> to vector<16x128xf32>
    %69 = vector.shape_cast %66 : vector<16x128xf32> to vector<1x16x128xf32>
    tpu.vector_store %arg8[%c0_54, %c0_55, %c0_56], %69 {strides = array<i32>} : memref<1x16x128xf32, #tpu.memory_space<vmem>>, vector<1x16x128xf32>,
    return
  }
  func.func @transform_0(%arg0: i32) -> (i32, i32, i32) {
    %c0_i32 = arith.constant 0 : i32
    %c0_i32_0 = arith.constant 0 : i32
    %c0_i32_1 = arith.constant 0 : i32
    return %arg0, %c0_i32, %c0_i32_0 : i32, i32, i32
  }
  func.func @transform_1(%arg0: i32) -> (i32, i32, i32) {
    %c0_i32 = arith.constant 0 : i32
    %c0_i32_0 = arith.constant 0 : i32
    %c0_i32_1 = arith.constant 0 : i32
    %c0_i32_2 = arith.constant 0 : i32
    return %c0_i32, %c0_i32_0, %c0_i32_1 : i32, i32, i32
  }
  func.func @transform_2(%arg0: i32) -> (i32, i32) {
    %c0_i32 = arith.constant 0 : i32
    %c0_i32_0 = arith.constant 0 : i32
    %c0_i32_1 = arith.constant 0 : i32
    return %c0_i32, %c0_i32_0 : i32, i32
  }
  func.func @transform_3(%arg0: i32) -> (i32, i32) {
    %c0_i32 = arith.constant 0 : i32
    %c0_i32_0 = arith.constant 0 : i32
    %c0_i32_1 = arith.constant 0 : i32
    return %c0_i32, %c0_i32_0 : i32, i32
  }
  func.func @transform_4(%arg0: i32) -> (i32, i32, i32) {
    %c0_i32 = arith.constant 0 : i32
    %c0_i32_0 = arith.constant 0 : i32
    %c0_i32_1 = arith.constant 0 : i32
    %c0_i32_2 = arith.constant 0 : i32
    return %c0_i32, %c0_i32_0, %c0_i32_1 : i32, i32, i32
  }
  func.func @transform_5(%arg0: i32) -> (i32, i32) {
    %c0_i32 = arith.constant 0 : i32
    %c0_i32_0 = arith.constant 0 : i32
    %c0_i32_1 = arith.constant 0 : i32
    return %c0_i32, %c0_i32_0 : i32, i32
  }
  func.func @transform_6(%arg0: i32) -> (i32, i32) {
    %c0_i32 = arith.constant 0 : i32
    %c0_i32_0 = arith.constant 0 : i32
    %c0_i32_1 = arith.constant 0 : i32
    return %c0_i32, %c0_i32_0 : i32, i32
  }
  func.func @transform_7(%arg0: i32) -> (i32, i32, i32) {
    %c0_i32 = arith.constant 0 : i32
    %c0_i32_0 = arith.constant 0 : i32
    %c0_i32_1 = arith.constant 0 : i32
    return %arg0, %c0_i32, %c0_i32_0 : i32, i32, i32
  }
}

</mosaic_0001>

<llo_original>
// kernel: basic_block_forward.1
$region0: #{basic_block_forward.1}
  #allocation0 [shape = 'u32[]', space=smem, size = 0x4, offset = 0x4, fixed_abs, tag = 'smem constant byte address 0x4 - core index']
  #allocation1 [shape = 'u32[144,128]{1,0:T(1,128)}', space=vmem, size = 0x12000, scoped, tag = 'internal scratch']
  #allocation2 [shape = 'f32[18,144]{1,0:T(8,128)}', space=vmem, size = 0x6000, scoped, tag = 'scratch operand']
  #allocation3 [shape = 'f32[18,144]{1,0:T(8,128)}', space=vmem, size = 0x6000, scoped, tag = 'scratch operand']
  %s0 = inlined_call_operand.vmem [shape: f32[2,16,128], index: 0, kind: input, shape index: {}]
  %s1 = inlined_call_operand.vmem [shape: bf16[3,144,128], index: 1, kind: input, shape index: {}]
  %s2 = inlined_call_operand.vmem [shape: f32[1,128], index: 2, kind: input, shape index: {}]
  %s3 = inlined_call_operand.vmem [shape: f32[1,128], index: 3, kind: input, shape index: {}]
  %s4 = inlined_call_operand.vmem [shape: bf16[3,144,128], index: 4, kind: input, shape index: {}]
  %s5 = inlined_call_operand.vmem [shape: f32[1,128], index: 5, kind: input, shape index: {}]
  %s6 = inlined_call_operand.vmem [shape: f32[1,128], index: 6, kind: input, shape index: {}]
  %s7 = inlined_call_operand.vmem [shape: f32[2,16,128], index: 7, kind: output, shape index: {}]
  %s8 = sld [smem:[#allocation0]]
  $region61: #{basic_block_forward.1} parent=0
    _
  %s10 = ssub.s32 1, %s8
  %s11 = scalar_select 0, %s10, %s8
  loop: start=0, step=1, limit=4
  $region2: #{basic_block_forward.1} parent=0 // loop_pre_header
    _
  $region3: #{basic_block_forward.1} parent=0 // loop_header
    %s13 = sphi 0, %s17
    %p14 = scmp.ge.s32.totalorder %s13, 4
    %s23 = sphi 0, %s25
    %s26 = sphi 0, %s23
    %s27 = sphi 0, %s26
    %s43 = sphi 0, %s27
    %s47 = sphi 0, %s47
    %s49 = sphi 0, %s47
    %s50 = sphi 0, %s49
    %s64 = sphi 0, %s50
    %s68 = sphi 0, %s68
    %s70 = sphi 0, %s68
    %s71 = sphi 0, %s70
    %s85 = sphi 0, %s71
    %s89 = sphi 0, %s89
    %s91 = sphi 0, %s89
    %s92 = sphi 0, %s91
    %s106 = sphi 0, %s92
    %s110 = sphi 0, %s110
    %s112 = sphi 0, %s110
    %s113 = sphi 0, %s112
    %s127 = sphi 0, %s113
    %s131 = sphi 0, %s131
    %s133 = sphi 0, %s131
    %s134 = sphi 0, %s133
    %s148 = sphi 0, %s134
    %s152 = sphi 0, %s152
    %s154 = sphi 0, %s152
    %s155 = sphi 0, %s154
    %s169 = sphi 0, %s155
    %s175 = sphi 0, %s177
    %s178 = sphi 0, %s175
    %s179 = sphi 0, %s178
    %s195 = sphi 0, %s179
  $region4: #{basic_block_forward.1} parent=0 // loop_header_branch
    %16 = sbr.rel (%p14) target = $region8
  $region5: #{basic_block_forward.1} parent=0 // loop_body
    %s18 = ssub.s32 %s13, 1
    %s19 = ssub.s32 %s13, 2
    %s20 = sadd.s32 %s13, 1
    %s21 = ssub.s32 %s13, %s20
    %p22 = scmp.eq.s32.totalorder %s21, 0
    %s24 = sadd.s32 %s23, 1
    %s25 = scalar_select %p22, %s23, %s24
    %p28 = pneg %p22
    %p29 = scmp.eq.s32.totalorder %s13, 1
    %p30 = por %p28, %p29
    %p31 = scmp.ne.s32.totalorder %s23, %s26
    %p32 = scmp.eq.s32.totalorder %s13, 0
    %p33 = por %p31, %p32
    %p34 = scmp.ne.s32.totalorder %s23, %s26
    %p35 = scmp.eq.s32.totalorder %s18, 1
    %p36 = por %p34, %p35
    %p37 = scmp.ne.s32.totalorder %s26, %s27
    %p38 = scmp.eq.s32.totalorder %s18, 0
    %p39 = por %p37, %p38
    %p40 = scmp.ne.s32.totalorder %s26, %s27
    %p41 = scmp.eq.s32.totalorder %s19, 1
    %p42 = por %p40, %p41
    %p44 = scmp.ne.s32.totalorder %s27, %s43
    %p45 = scmp.eq.s32.totalorder %s19, 0
    %p46 = por %p44, %p45
    %s48 = sadd.s32 %s47, 1
    %p51 = scmp.eq.s32.totalorder %s13, 1
    %p52 = scmp.ne.s32.totalorder %s47, %s49
    %p53 = scmp.eq.s32.totalorder %s13, 0
    %p54 = por %p52, %p53
    %p55 = scmp.ne.s32.totalorder %s47, %s49
    %p56 = scmp.eq.s32.totalorder %s18, 1
    %p57 = por %p55, %p56
    %p58 = scmp.ne.s32.totalorder %s49, %s50
    %p59 = scmp.eq.s32.totalorder %s18, 0
    %p60 = por %p58, %p59
    %p61 = scmp.ne.s32.totalorder %s49, %s50
    %p62 = scmp.eq.s32.totalorder %s19, 1
    %p63 = por %p61, %p62
    %p65 = scmp.ne.s32.totalorder %s50, %s64
    %p66 = scmp.eq.s32.totalorder %s19, 0
    %p67 = por %p65, %p66
    %s69 = sadd.s32 %s68, 1
    %p72 = scmp.eq.s32.totalorder %s13, 1
    %p73 = scmp.ne.s32.totalorder %s68, %s70
    %p74 = scmp.eq.s32.totalorder %s13, 0
    %p75 = por %p73, %p74
    %p76 = scmp.ne.s32.totalorder %s68, %s70
    %p77 = scmp.eq.s32.totalorder %s18, 1
    %p78 = por %p76, %p77
    %p79 = scmp.ne.s32.totalorder %s70, %s71
    %p80 = scmp.eq.s32.totalorder %s18, 0
    %p81 = por %p79, %p80
    %p82 = scmp.ne.s32.totalorder %s70, %s71
    %p83 = scmp.eq.s32.totalorder %s19, 1
    %p84 = por %p82, %p83
    %p86 = scmp.ne.s32.totalorder %s71, %s85
    %p87 = scmp.eq.s32.totalorder %s19, 0
    %p88 = por %p86, %p87
    %s90 = sadd.s32 %s89, 1
    %p93 = scmp.eq.s32.totalorder %s13, 1
    %p94 = scmp.ne.s32.totalorder %s89, %s91
    %p95 = scmp.eq.s32.totalorder %s13, 0
    %p96 = por %p94, %p95
    %p97 = scmp.ne.s32.totalorder %s89, %s91
    %p98 = scmp.eq.s32.totalorder %s18, 1
    %p99 = por %p97, %p98
    %p100 = scmp.ne.s32.totalorder %s91, %s92
    %p101 = scmp.eq.s32.totalorder %s18, 0
    %p102 = por %p100, %p101
    %p103 = scmp.ne.s32.totalorder %s91, %s92
    %p104 = scmp.eq.s32.totalorder %s19, 1
    %p105 = por %p103, %p104
    %p107 = scmp.ne.s32.totalorder %s92, %s106
    %p108 = scmp.eq.s32.totalorder %s19, 0
    %p109 = por %p107, %p108
    %s111 = sadd.s32 %s110, 1
    %p114 = scmp.eq.s32.totalorder %s13, 1
    %p115 = scmp.ne.s32.totalorder %s110, %s112
    %p116 = scmp.eq.s32.totalorder %s13, 0
    %p117 = por %p115, %p116
    %p118 = scmp.ne.s32.totalorder %s110, %s112
    %p119 = scmp.eq.s32.totalorder %s18, 1
    %p120 = por %p118, %p119
    %p121 = scmp.ne.s32.totalorder %s112, %s113
    %p122 = scmp.eq.s32.totalorder %s18, 0
    %p123 = por %p121, %p122
    %p124 = scmp.ne.s32.totalorder %s112, %s113
    %p125 = scmp.eq.s32.totalorder %s19, 1
    %p126 = por %p124, %p125
    %p128 = scmp.ne.s32.totalorder %s113, %s127
    %p129 = scmp.eq.s32.totalorder %s19, 0
    %p130 = por %p128, %p129
    %s132 = sadd.s32 %s131, 1
    %p135 = scmp.eq.s32.totalorder %s13, 1
    %p136 = scmp.ne.s32.totalorder %s131, %s133
    %p137 = scmp.eq.s32.totalorder %s13, 0
    %p138 = por %p136, %p137
    %p139 = scmp.ne.s32.totalorder %s131, %s133
    %p140 = scmp.eq.s32.totalorder %s18, 1
    %p141 = por %p139, %p140
    %p142 = scmp.ne.s32.totalorder %s133, %s134
    %p143 = scmp.eq.s32.totalorder %s18, 0
    %p144 = por %p142, %p143
    %p145 = scmp.ne.s32.totalorder %s133, %s134
    %p146 = scmp.eq.s32.totalorder %s19, 1
    %p147 = por %p145, %p146
    %p149 = scmp.ne.s32.totalorder %s134, %s148
    %p150 = scmp.eq.s32.totalorder %s19, 0
    %p151 = por %p149, %p150
    %s153 = sadd.s32 %s152, 1
    %p156 = scmp.eq.s32.totalorder %s13, 1
    %p157 = scmp.ne.s32.totalorder %s152, %s154
    %p158 = scmp.eq.s32.totalorder %s13, 0
    %p159 = por %p157, %p158
    %p160 = scmp.ne.s32.totalorder %s152, %s154
    %p161 = scmp.eq.s32.totalorder %s18, 1
    %p162 = por %p160, %p161
    %p163 = scmp.ne.s32.totalorder %s154, %s155
    %p164 = scmp.eq.s32.totalorder %s18, 0
    %p165 = por %p163, %p164
    %p166 = scmp.ne.s32.totalorder %s154, %s155
    %p167 = scmp.eq.s32.totalorder %s19, 1
    %p168 = por %p166, %p167
    %p170 = scmp.ne.s32.totalorder %s155, %s169
    %p171 = scmp.eq.s32.totalorder %s19, 0
    %p172 = por %p170, %p171
    %s173 = ssub.s32 %s13, %s20
    %p174 = scmp.eq.s32.totalorder %s173, 0
    %s176 = sadd.s32 %s175, 1
    %s177 = scalar_select %p174, %s175, %s176
    %p180 = pneg %p174
    %p181 = scmp.eq.s32.totalorder %s13, 1
    %p182 = por %p180, %p181
    %p183 = scmp.ne.s32.totalorder %s175, %s178
    %p184 = scmp.eq.s32.totalorder %s13, 0
    %p185 = por %p183, %p184
    %p186 = scmp.ne.s32.totalorder %s175, %s178
    %p187 = scmp.eq.s32.totalorder %s18, 1
    %p188 = por %p186, %p187
    %p189 = scmp.ne.s32.totalorder %s178, %s179
    %p190 = scmp.eq.s32.totalorder %s18, 0
    %p191 = por %p189, %p190
    %p192 = scmp.ne.s32.totalorder %s178, %s179
    %p193 = scmp.eq.s32.totalorder %s19, 1
    %p194 = por %p192, %p193
    %p196 = scmp.ne.s32.totalorder %s179, %s195
    %p197 = scmp.eq.s32.totalorder %s19, 0
    %p198 = por %p196, %p197
    %p199 = scmp.le.s32.totalorder 1, %s13
    %p200 = scmp.lt.s32.totalorder %s13, 3
    %p201 = pnand %p199, %p200
    %p202 = pneg %p201
    // Predicated region
    $region9: #{basic_block_forward.1} parent=5 // pred_check
      _
    $region10: #{basic_block_forward.1} parent=5 // pred_check_branch
      %204 = sbr.rel (%p201) target = $region12
    $region11: #{basic_block_forward.1} parent=5 // pred_region
      %s205 = ssub.s32 %s13, 1
      // Predicated region
      $region13: #{basic_block_forward.1} parent=11 // pred_check
        %p206 = pneg %p60
      $region14: #{basic_block_forward.1} parent=11 // pred_check_branch
        %208 = sbr.rel (%p206) target = $region16
      $region15: #{basic_block_forward.1} parent=11 // pred_region
        _
      $region16: #{basic_block_forward.1} parent=11 // pred_fallthru
        _
      // Predicated region
      $region17: #{basic_block_forward.1} parent=11 // pred_check
        %p209 = pneg %p81
      $region18: #{basic_block_forward.1} parent=11 // pred_check_branch
        %211 = sbr.rel (%p209) target = $region20
      $region19: #{basic_block_forward.1} parent=11 // pred_region
        _
      $region20: #{basic_block_forward.1} parent=11 // pred_fallthru
        _
      // Predicated region
      $region21: #{basic_block_forward.1} parent=11 // pred_check
        %p212 = pneg %p102
      $region22: #{basic_block_forward.1} parent=11 // pred_check_branch
        %214 = sbr.rel (%p212) target = $region24
      $region23: #{basic_block_forward.1} parent=11 // pred_region
        _
      $region24: #{basic_block_forward.1} parent=11 // pred_fallthru
        _
      // Predicated region
      $region25: #{basic_block_forward.1} parent=11 // pred_check
        %p215 = pneg %p123
      $region26: #{basic_block_forward.1} parent=11 // pred_check_branch
        %217 = sbr.rel (%p215) target = $region28
      $region27: #{basic_block_forward.1} parent=11 // pred_region
        _
      $region28: #{basic_block_forward.1} parent=11 // pred_fallthru
        _
      // Predicated region
      $region29: #{basic_block_forward.1} parent=11 // pred_check
        %p218 = pneg %p144
      $region30: #{basic_block_forward.1} parent=11 // pred_check_branch
        %220 = sbr.rel (%p218) target = $region32
      $region31: #{basic_block_forward.1} parent=11 // pred_region
        _
      $region32: #{basic_block_forward.1} parent=11 // pred_fallthru
        _
      // Predicated region
      $region33: #{basic_block_forward.1} parent=11 // pred_check
        %p221 = pneg %p165
      $region34: #{basic_block_forward.1} parent=11 // pred_check_branch
        %223 = sbr.rel (%p221) target = $region36
      $region35: #{basic_block_forward.1} parent=11 // pred_region
        _
      $region36: #{basic_block_forward.1} parent=11 // pred_fallthru
        _
    $region12: #{basic_block_forward.1} parent=5 // pred_fallthru
      _
    %p224 = scmp.lt.s32.totalorder %s13, 2
    // Predicated region
    $region37: #{basic_block_forward.1} parent=5 // pred_check
      %p225 = pneg %p224
    $region38: #{basic_block_forward.1} parent=5 // pred_check_branch
      %227 = sbr.rel (%p225) target = $region40
    $region39: #{basic_block_forward.1} parent=5 // pred_region
      // Predicated region
      $region41: #{basic_block_forward.1} parent=39 // pred_check
        %p228 = pneg %p33
      $region42: #{basic_block_forward.1} parent=39 // pred_check_branch
        %230 = sbr.rel (%p228) target = $region44
      $region43: #{basic_block_forward.1} parent=39 // pred_region
        %p231 = scmp.lt.s32.totalorder %s13, 1
        %s232 = scalar_select %p231, %s13, 1
        %s233 = smul.addr %s232, 2
        %s234 = smul.addr %s233, 8
        %s235 = scalar_lea.vmem %s0, %s234
      $region44: #{basic_block_forward.1} parent=39 // pred_fallthru
        _
    $region40: #{basic_block_forward.1} parent=5 // pred_fallthru
      _
    %p236 = scmp.le.s32.totalorder 1, %s13
    %p237 = scmp.lt.s32.totalorder %s13, 3
    %p238 = pnand %p236, %p237
    %p239 = pneg %p238
    // Predicated region
    $region45: #{basic_block_forward.1} parent=5 // pred_check
      _
    $region46: #{basic_block_forward.1} parent=5 // pred_check_branch
      %241 = sbr.rel (%p238) target = $region48
    $region47: #{basic_block_forward.1} parent=5 // pred_region
      %s242 = ssub.s32 %s13, 1
      %p243 = scmp.lt.s32.totalorder %s18, 1
      %s244 = scalar_select %p243, %s18, 1
      %s245 = smul.addr %s244, 2
      %s246 = smul.addr %s245, 8
      %s247 = scalar_lea.vmem %s0, %s246
      %p248 = pneg %p39
      %p249 = pneg %p36
      %p250 = pneg %p60
      %p251 = pneg %p57
      %p252 = pneg %p81
      %p253 = pneg %p78
      %p254 = pneg %p102
      %p255 = pneg %p99
      %p256 = pneg %p123
      %p257 = pneg %p120
      %p258 = pneg %p144
      %p259 = pneg %p141
      %p260 = pneg %p165
      %p261 = pneg %p162
      %p262 = pneg %p191
      %p263 = pneg %p188
      %p264 = scmp.lt.s32.totalorder %s18, 1
      %s265 = scalar_select %p264, %s18, 1
      %s266 = smul.addr %s265, 2
      %s267 = smul.addr %s266, 8
      %s268 = scalar_lea.vmem %s7, %s267
      %p269 = scmp.lt.s32.totalorder %s18, 1
      %s270 = scalar_select %p269, %s18, 1
      %s271 = smul.addr %s270, 2
      %s272 = smul.addr %s271, 8
      %s273 = scalar_lea.vmem %s0, %s272
      %p274 = scmp.lt.s32.totalorder %s18, 1
      %s275 = scalar_select %p274, %s18, 1
      %s276 = smul.addr %s275, 2
      %s277 = smul.addr %s276, 8
      %s278 = scalar_lea.vmem %s7, %s277
      %v280 = vld [vmem:[%s273] sm:$0xff]
      %v281 = vld [vmem:[%s273 + $0x8] sm:$0xff]
      %282 = vst [vmem:[#allocation2] sm:$0xff] 0.0
      %vm283 = vcmask 130048
      %284 = vst.msk [vmem:[#allocation2 + $0x8] sm:$0xff] %vm283, 0.0
      %285 = vst [vmem:[#allocation2 + $0x10] sm:$0xff] 0.0
      %286 = vst.msk [vmem:[#allocation2 + $0x18] sm:$0xff] %vm283, 0.0
      %287 = vst [vmem:[#allocation2 + $0x20] sm:$0x3] 0.0
      %vm288 = vcmask 123904
      %289 = vst.msk [vmem:[#allocation2 + $0x28] sm:$0x3] %vm288, 0.0
      %vm292 = vcmask 1040384
      %v293 = vrot.slane %v280, 7
      %v294 = vrot.slane %v281, 7
      %v295 = vsel %vm292, %v293, %v294
      %296 = vrot.lane.b32.xlu0 %v293, 8
      %v297 = vpop.permute.xlu0 %296
      %298 = vrot.lane.b32.xlu0 %v295, 8
      %v299 = vpop.permute.xlu0 %298
      %300 = vrot.lane.b32.xlu0 %v294, 8
      %v301 = vpop.permute.xlu0 %300
      %vm305 = vcmask 1047617
      %306 = vst.msk [vmem:[#allocation2] sm:$0xfe] %vm305, %v297
      %vm307 = vcmask 64513
      %308 = vst.msk [vmem:[#allocation2 + $0x8] sm:$0xfe] %vm307, %v297
      %vm309 = vcmask 1047616
      %310 = vst.msk [vmem:[#allocation2 + $0x10] sm:$0xff] %vm309, %v299
      %vm311 = vcmask 64512
      %312 = vst.msk [vmem:[#allocation2 + $0x18] sm:$0xff] %vm311, %v299
      %vm313 = vcmask 1040448
      %314 = vst.msk [vmem:[#allocation2 + $0x20] sm:$0x1] %vm313, %v301
      %vm315 = vcmask 57344
      %316 = vst.msk [vmem:[#allocation2 + $0x28] sm:$0x1] %vm315, %v301
      %v317 = vld [vmem:[#allocation2] sm:$0xff]
      %v318 = vld [vmem:[#allocation2 + $0x8] sm:$0xff]
      %v319 = vld [vmem:[#allocation2 + $0x10] sm:$0xff]
      %v320 = vld [vmem:[#allocation2 + $0x18] sm:$0xff]
      %v321 = vpack.c.bf16 %v319, %v317
      %v322 = vpack.c.bf16 %v320, %v318
      %v323 = vld [vmem:[%s1] sm:$0xf]
      %v324 = vld [vmem:[%s1 + $0x4] sm:$0xf]
      %v325 = vld [vmem:[%s1 + $0x8] sm:$0xf]
      %v326 = vld [vmem:[%s1 + $0xc] sm:$0xf]
      %v327 = vld [vmem:[%s1 + $0x10] sm:$0xf]
      %v328 = vld [vmem:[%s1 + $0x14] sm:$0xf]
      %v329 = vld [vmem:[%s1 + $0x18] sm:$0xf]
      %v330 = vld [vmem:[%s1 + $0x1c] sm:$0xf]
      %v331 = vld [vmem:[%s1 + $0x20] sm:$0xf]
      %v332 = vld [vmem:[%s1 + $0x24] sm:$0xf]
      %v333 = vld [vmem:[%s1 + $0x28] sm:$0xf]
      %v334 = vld [vmem:[%s1 + $0x2c] sm:$0xf]
      %v335 = vld [vmem:[%s1 + $0x30] sm:$0xf]
      %v336 = vld [vmem:[%s1 + $0x34] sm:$0xf]
      %v337 = vld [vmem:[%s1 + $0x38] sm:$0xf]
      %v338 = vld [vmem:[%s1 + $0x3c] sm:$0xf]
      %v339 = vld [vmem:[%s1 + $0x40] sm:$0xf]
      %v340 = vld [vmem:[%s1 + $0x44] sm:$0xf]
      %v341 = vld [vmem:[#allocation2] sm:$0xfe]
      %v342 = vld [vmem:[#allocation2 + $0x8] sm:$0xfe]
      %v343 = vld [vmem:[#allocation2 + $0x20] sm:$0x1]
      %v344 = vld [vmem:[#allocation2 + $0x28] sm:$0x1]
      %v345 = vpack.c.bf16 %v319, %v341
      %v346 = vpack.c.bf16 %v320, %v342
      %v347 = vpack.c.bf16 %v343, %v343
      %v348 = vpack.c.bf16 %v344, %v344
      %s349 = scalar_lea.vmem %s1, 72
      %v350 = vld [vmem:[%s349] sm:$0xf]
      %v351 = vld [vmem:[%s349 + $0x4] sm:$0xf]
      %v352 = vld [vmem:[%s349 + $0x8] sm:$0xf]
      %v353 = vld [vmem:[%s349 + $0xc] sm:$0xf]
      %v354 = vld [vmem:[%s349 + $0x10] sm:$0xf]
      %v355 = vld [vmem:[%s349 + $0x14] sm:$0xf]
      %v356 = vld [vmem:[%s349 + $0x18] sm:$0xf]
      %v357 = vld [vmem:[%s349 + $0x1c] sm:$0xf]
      %v358 = vld [vmem:[%s349 + $0x20] sm:$0xf]
      %v359 = vld [vmem:[%s349 + $0x24] sm:$0xf]
      %v360 = vld [vmem:[%s349 + $0x28] sm:$0xf]
      %v361 = vld [vmem:[%s349 + $0x2c] sm:$0xf]
      %v362 = vld [vmem:[%s349 + $0x30] sm:$0xf]
      %v363 = vld [vmem:[%s349 + $0x34] sm:$0xf]
      %v364 = vld [vmem:[%s349 + $0x38] sm:$0xf]
      %v365 = vld [vmem:[%s349 + $0x3c] sm:$0xf]
      %v366 = vld [vmem:[%s349 + $0x40] sm:$0xf]
      %v367 = vld [vmem:[%s349 + $0x44] sm:$0xf]
      %vm368 = vsmask.f32 7424
      %v370 = vshrl.u32 %v345, 16
      %v372 = vshll.u32 %v345, 16
      %v374 = vrot.slane %v372, 1
      %v375 = vor.u32 %v370, %v374
      %v377 = vshll.u32 %v347, 16
      %v379 = vrot.slane %v377, 1
      %v380 = vsel %vm368, %v375, %v379
      %v382 = vshrl.u32 %v346, 16
      %v384 = vshll.u32 %v346, 16
      %v386 = vrot.slane %v384, 1
      %v387 = vor.u32 %v382, %v386
      %v389 = vshll.u32 %v348, 16
      %v391 = vrot.slane %v389, 1
      %v392 = vsel %vm368, %v387, %v391
      %v412 = vunpack.c.l.b16 %v350
      %v413 = vunpack.c.l.b16 %v351
      %v414 = vunpack.c.l.b16 %v352
      %v415 = vunpack.c.l.b16 %v353
      %v416 = vunpack.c.l.b16 %v354
      %v417 = vunpack.c.l.b16 %v355
      %v418 = vunpack.c.l.b16 %v356
      %v419 = vunpack.c.l.b16 %v357
      %v420 = vunpack.c.l.b16 %v358
      %v421 = vunpack.c.l.b16 %v359
      %v422 = vunpack.c.l.b16 %v360
      %v423 = vunpack.c.l.b16 %v361
      %v424 = vunpack.c.l.b16 %v362
      %v425 = vunpack.c.l.b16 %v363
      %v426 = vunpack.c.l.b16 %v364
      %v427 = vunpack.c.l.b16 %v365
      %v428 = vunpack.c.l.b16 %v366
      %v429 = vunpack.c.l.b16 %v367
      %v430 = vpack.c.b16 %v413, %v412
      %v431 = vpack.c.b16 %v415, %v414
      %v432 = vpack.c.b16 %v417, %v416
      %v433 = vpack.c.b16 %v419, %v418
      %v434 = vpack.c.b16 %v421, %v420
      %v435 = vpack.c.b16 %v423, %v422
      %v436 = vpack.c.b16 %v425, %v424
      %v437 = vpack.c.b16 %v427, %v426
      %v438 = vpack.c.b16 %v429, %v428
      %v449 = vsel %vm283, %v392, 0
      %451 = vmatprep.subr.bf16.mxu0 0
      %452 = vmatpush1.bf16.msra.mxu0 %v430
      %453 = vmatprep.subr.bf16.mxu0 0
      %454 = vmatpush1.bf16.msra.mxu0 %v431
      %455 = vmatprep.subr.bf16.mxu0 0
      %456 = vmatpush1.bf16.msra.mxu0 %v432
      %457 = vmatprep.subr.bf16.mxu0 0
      %458 = vmatpush1.bf16.msra.mxu0 %v433
      %459 = vmatprep.subr.bf16.mxu0 0
      %460 = vmatpush1.bf16.msra.mxu0 %v434
      %461 = vmatprep.subr.bf16.mxu0 0
      %462 = vmatpush1.bf16.msra.mxu0 %v435
      %463 = vmatprep.subr.bf16.mxu0 0
      %464 = vmatpush1.bf16.msra.mxu0 %v436
      %465 = vmatprep.subr.bf16.mxu0 0
      %466 = vmatpush1.bf16.msra.mxu0 %v437
      %467 = vmatprep.subr.bf16.mxu0 0
      %468 = vmatpush1.bf16.msra.mxu0 %v438
      %469 = vmatprep.subr.bf16.mxu0 0
      %470 = vmatpush1.bf16.msra.mxu0 0
      %471 = vmatprep.subr.bf16.mxu0 0
      %472 = vmatpush1.bf16.msra.mxu0 0
      %473 = vmatprep.subr.bf16.mxu0 0
      %474 = vmatpush1.bf16.msra.mxu0 0
      %475 = vmatprep.subr.bf16.mxu0 0
      %476 = vmatpush1.bf16.msra.mxu0 0
      %477 = vmatprep.subr.bf16.mxu0 0
      %478 = vmatpush1.bf16.msra.mxu0 0
      %479 = vmatprep.subr.bf16.mxu0 0
      %480 = vmatpush1.bf16.msra.mxu0 0
      %481 = vmatprep.subr.bf16.mxu0 0
      %482 = vmatpush1.bf16.msra.mxu0 0
      %483 = vmatprep.mubr.bf16.mxu0 %v449
      %484 = vmatmul.mubr.bf16.gmra.mrb[0].mxu0 %v380
      %v485 = vpop.f32.mrb[0].mxu0
      %v486 = vadd.f32 0.0, %v485
      %v487 = vpop.f32.mrb[0].mxu0
      %v488 = vpop.f32.mrb[0].mxu0
      %v489 = vadd.f32 0.0, %v488
      %v490 = vpop.f32.mrb[0].mxu0
      %491 = vdwg.mxu0
      %v510 = vunpack.c.l.b16 %v323
      %v511 = vunpack.c.l.b16 %v324
      %v512 = vunpack.c.l.b16 %v325
      %v513 = vunpack.c.l.b16 %v326
      %v514 = vunpack.c.l.b16 %v327
      %v515 = vunpack.c.l.b16 %v328
      %v516 = vunpack.c.l.b16 %v329
      %v517 = vunpack.c.l.b16 %v330
      %v518 = vunpack.c.l.b16 %v331
      %v519 = vunpack.c.l.b16 %v332
      %v520 = vunpack.c.l.b16 %v333
      %v521 = vunpack.c.l.b16 %v334
      %v522 = vunpack.c.l.b16 %v335
      %v523 = vunpack.c.l.b16 %v336
      %v524 = vunpack.c.l.b16 %v337
      %v525 = vunpack.c.l.b16 %v338
      %v526 = vunpack.c.l.b16 %v339
      %v527 = vunpack.c.l.b16 %v340
      %v528 = vpack.c.b16 %v511, %v510
      %v529 = vpack.c.b16 %v513, %v512
      %v530 = vpack.c.b16 %v515, %v514
      %v531 = vpack.c.b16 %v517, %v516
      %v532 = vpack.c.b16 %v519, %v518
      %v533 = vpack.c.b16 %v521, %v520
      %v534 = vpack.c.b16 %v523, %v522
      %v535 = vpack.c.b16 %v525, %v524
      %v536 = vpack.c.b16 %v527, %v526
      %v547 = vsel %vm283, %v322, 0
      %549 = vmatprep.subr.bf16.mxu0 0
      %550 = vmatpush1.bf16.msra.mxu0 %v528
      %551 = vmatprep.subr.bf16.mxu0 0
      %552 = vmatpush1.bf16.msra.mxu0 %v529
      %553 = vmatprep.subr.bf16.mxu0 0
      %554 = vmatpush1.bf16.msra.mxu0 %v530
      %555 = vmatprep.subr.bf16.mxu0 0
      %556 = vmatpush1.bf16.msra.mxu0 %v531
      %557 = vmatprep.subr.bf16.mxu0 0
      %558 = vmatpush1.bf16.msra.mxu0 %v532
      %559 = vmatprep.subr.bf16.mxu0 0
      %560 = vmatpush1.bf16.msra.mxu0 %v533
      %561 = vmatprep.subr.bf16.mxu0 0
      %562 = vmatpush1.bf16.msra.mxu0 %v534
      %563 = vmatprep.subr.bf16.mxu0 0
      %564 = vmatpush1.bf16.msra.mxu0 %v535
      %565 = vmatprep.subr.bf16.mxu0 0
      %566 = vmatpush1.bf16.msra.mxu0 %v536
      %567 = vmatprep.subr.bf16.mxu0 0
      %568 = vmatpush1.bf16.msra.mxu0 0
      %569 = vmatprep.subr.bf16.mxu0 0
      %570 = vmatpush1.bf16.msra.mxu0 0
      %571 = vmatprep.subr.bf16.mxu0 0
      %572 = vmatpush1.bf16.msra.mxu0 0
      %573 = vmatprep.subr.bf16.mxu0 0
      %574 = vmatpush1.bf16.msra.mxu0 0
      %575 = vmatprep.subr.bf16.mxu0 0
      %576 = vmatpush1.bf16.msra.mxu0 0
      %577 = vmatprep.subr.bf16.mxu0 0
      %578 = vmatpush1.bf16.msra.mxu0 0
      %579 = vmatprep.subr.bf16.mxu0 0
      %580 = vmatpush1.bf16.msra.mxu0 0
      %581 = vmatprep.mubr.bf16.mxu0 %v547
      %582 = vmatmul.mubr.bf16.gmra.mrb[0].mxu0 %v321
      %v583 = vpop.f32.mrb[0].mxu0
      %v584 = vadd.f32 %v486, %v583
      %v585 = vpop.f32.mrb[0].mxu0
      %v586 = vpop.f32.mrb[0].mxu0
      %v587 = vadd.f32 %v489, %v586
      %v588 = vpop.f32.mrb[0].mxu0
      %589 = vdwg.mxu0
      %v590 = vld [vmem:[#allocation2] sm:$0xfc]
      %v591 = vld [vmem:[#allocation2 + $0x8] sm:$0xfc]
      %v592 = vld [vmem:[#allocation2 + $0x20] sm:$0x3]
      %v593 = vld [vmem:[#allocation2 + $0x28] sm:$0x3]
      %v594 = vpack.c.bf16 %v319, %v590
      %v595 = vpack.c.bf16 %v320, %v591
      %v596 = vpack.c.bf16 %v592, %v592
      %v597 = vpack.c.bf16 %v593, %v593
      %s598 = scalar_lea.vmem %s1, 144
      %v599 = vld [vmem:[%s598] sm:$0xf]
      %v600 = vld [vmem:[%s598 + $0x4] sm:$0xf]
      %v601 = vld [vmem:[%s598 + $0x8] sm:$0xf]
      %v602 = vld [vmem:[%s598 + $0xc] sm:$0xf]
      %v603 = vld [vmem:[%s598 + $0x10] sm:$0xf]
      %v604 = vld [vmem:[%s598 + $0x14] sm:$0xf]
      %v605 = vld [vmem:[%s598 + $0x18] sm:$0xf]
      %v606 = vld [vmem:[%s598 + $0x1c] sm:$0xf]
      %v607 = vld [vmem:[%s598 + $0x20] sm:$0xf]
      %v608 = vld [vmem:[%s598 + $0x24] sm:$0xf]
      %v609 = vld [vmem:[%s598 + $0x28] sm:$0xf]
      %v610 = vld [vmem:[%s598 + $0x2c] sm:$0xf]
      %v611 = vld [vmem:[%s598 + $0x30] sm:$0xf]
      %v612 = vld [vmem:[%s598 + $0x34] sm:$0xf]
      %v613 = vld [vmem:[%s598 + $0x38] sm:$0xf]
      %v614 = vld [vmem:[%s598 + $0x3c] sm:$0xf]
      %v615 = vld [vmem:[%s598 + $0x40] sm:$0xf]
      %v616 = vld [vmem:[%s598 + $0x44] sm:$0xf]
      %vm621 = vcmask 1046528
      %v622 = vrot.slane %v594, 1
      %v623 = vrot.slane %v596, 1
      %v624 = vsel %vm621, %v622, %v623
      %v625 = vrot.slane %v595, 1
      %v626 = vrot.slane %v597, 1
      %v627 = vsel %vm621, %v625, %v626
      %v647 = vunpack.c.l.b16 %v599
      %v648 = vunpack.c.l.b16 %v600
      %v649 = vunpack.c.l.b16 %v601
      %v650 = vunpack.c.l.b16 %v602
      %v651 = vunpack.c.l.b16 %v603
      %v652 = vunpack.c.l.b16 %v604
      %v653 = vunpack.c.l.b16 %v605
      %v654 = vunpack.c.l.b16 %v606
      %v655 = vunpack.c.l.b16 %v607
      %v656 = vunpack.c.l.b16 %v608
      %v657 = vunpack.c.l.b16 %v609
      %v658 = vunpack.c.l.b16 %v610
      %v659 = vunpack.c.l.b16 %v611
      %v660 = vunpack.c.l.b16 %v612
      %v661 = vunpack.c.l.b16 %v613
      %v662 = vunpack.c.l.b16 %v614
      %v663 = vunpack.c.l.b16 %v615
      %v664 = vunpack.c.l.b16 %v616
      %v665 = vpack.c.b16 %v648, %v647
      %v666 = vpack.c.b16 %v650, %v649
      %v667 = vpack.c.b16 %v652, %v651
      %v668 = vpack.c.b16 %v654, %v653
      %v669 = vpack.c.b16 %v656, %v655
      %v670 = vpack.c.b16 %v658, %v657
      %v671 = vpack.c.b16 %v660, %v659
      %v672 = vpack.c.b16 %v662, %v661
      %v673 = vpack.c.b16 %v664, %v663
      %v684 = vsel %vm283, %v627, 0
      %686 = vmatprep.subr.bf16.mxu0 0
      %687 = vmatpush1.bf16.msra.mxu0 %v665
      %688 = vmatprep.subr.bf16.mxu0 0
      %689 = vmatpush1.bf16.msra.mxu0 %v666
      %690 = vmatprep.subr.bf16.mxu0 0
      %691 = vmatpush1.bf16.msra.mxu0 %v667
      %692 = vmatprep.subr.bf16.mxu0 0
      %693 = vmatpush1.bf16.msra.mxu0 %v668
      %694 = vmatprep.subr.bf16.mxu0 0
      %695 = vmatpush1.bf16.msra.mxu0 %v669
      %696 = vmatprep.subr.bf16.mxu0 0
      %697 = vmatpush1.bf16.msra.mxu0 %v670
      %698 = vmatprep.subr.bf16.mxu0 0
      %699 = vmatpush1.bf16.msra.mxu0 %v671
      %700 = vmatprep.subr.bf16.mxu0 0
      %701 = vmatpush1.bf16.msra.mxu0 %v672
      %702 = vmatprep.subr.bf16.mxu0 0
      %703 = vmatpush1.bf16.msra.mxu0 %v673
      %704 = vmatprep.subr.bf16.mxu0 0
      %705 = vmatpush1.bf16.msra.mxu0 0
      %706 = vmatprep.subr.bf16.mxu0 0
      %707 = vmatpush1.bf16.msra.mxu0 0
      %708 = vmatprep.subr.bf16.mxu0 0
      %709 = vmatpush1.bf16.msra.mxu0 0
      %710 = vmatprep.subr.bf16.mxu0 0
      %711 = vmatpush1.bf16.msra.mxu0 0
      %712 = vmatprep.subr.bf16.mxu0 0
      %713 = vmatpush1.bf16.msra.mxu0 0
      %714 = vmatprep.subr.bf16.mxu0 0
      %715 = vmatpush1.bf16.msra.mxu0 0
      %716 = vmatprep.subr.bf16.mxu0 0
      %717 = vmatpush1.bf16.msra.mxu0 0
      %718 = vmatprep.mubr.bf16.mxu0 %v684
      %719 = vmatmul.mubr.bf16.gmra.mrb[0].mxu0 %v624
      %v720 = vpop.f32.mrb[0].mxu0
      %v721 = vadd.f32 0.0, %v720
      %v722 = vpop.f32.mrb[0].mxu0
      %v723 = vpop.f32.mrb[0].mxu0
      %v724 = vadd.f32 0.0, %v723
      %v725 = vpop.f32.mrb[0].mxu0
      %726 = vdwg.mxu0
      %v727 = vadd.f32 %v584, %v721
      %v728 = vadd.f32 %v587, %v724
      %v729 = vld [vmem:[%s2] sm:$0x1]
      %v731 = vlaneseq
      %v732 = vshrl.u32 %v731, 7
      %v733 = vsub.s32 0, %v732
      %v734 = vrot.slane %v729, %v733
      %v736 = vmul.f32 %v727, %v734
      %v737 = vmul.f32 %v728, %v734
      %v738 = vld [vmem:[%s3] sm:$0x1]
      %v740 = vlaneseq
      %v741 = vshrl.u32 %v740, 7
      %v742 = vsub.s32 0, %v741
      %v743 = vrot.slane %v738, %v742
      %v745 = vadd.f32 %v736, %v743
      %v746 = vadd.f32 %v737, %v743
      %v747 = vmax.f32 %v745, 0.0
      %v748 = vmax.f32 %v746, 0.0
      %749 = vst [vmem:[#allocation3] sm:$0xff] 0.0
      %750 = vst.msk [vmem:[#allocation3 + $0x8] sm:$0xff] %vm283, 0.0
      %751 = vst [vmem:[#allocation3 + $0x10] sm:$0xff] 0.0
      %752 = vst.msk [vmem:[#allocation3 + $0x18] sm:$0xff] %vm283, 0.0
      %753 = vst [vmem:[#allocation3 + $0x20] sm:$0x3] 0.0
      %754 = vst.msk [vmem:[#allocation3 + $0x28] sm:$0x3] %vm288, 0.0
      %v757 = vrot.slane %v747, 7
      %v758 = vrot.slane %v748, 7
      %v759 = vsel %vm292, %v757, %v758
      %760 = vrot.lane.b32.xlu0 %v757, 8
      %v761 = vpop.permute.xlu0 %760
      %762 = vrot.lane.b32.xlu0 %v759, 8
      %v763 = vpop.permute.xlu0 %762
      %764 = vrot.lane.b32.xlu0 %v758, 8
      %v765 = vpop.permute.xlu0 %764
      %769 = vst.msk [vmem:[#allocation3] sm:$0xfe] %vm305, %v761
      %770 = vst.msk [vmem:[#allocation3 + $0x8] sm:$0xfe] %vm307, %v761
      %771 = vst.msk [vmem:[#allocation3 + $0x10] sm:$0xff] %vm309, %v763
      %772 = vst.msk [vmem:[#allocation3 + $0x18] sm:$0xff] %vm311, %v763
      %773 = vst.msk [vmem:[#allocation3 + $0x20] sm:$0x1] %vm313, %v765
      %774 = vst.msk [vmem:[#allocation3 + $0x28] sm:$0x1] %vm315, %v765
      %v775 = vld [vmem:[#allocation3] sm:$0xff]
      %v776 = vld [vmem:[#allocation3 + $0x8] sm:$0xff]
      %v777 = vld [vmem:[#allocation3 + $0x10] sm:$0xff]
      %v778 = vld [vmem:[#allocation3 + $0x18] sm:$0xff]
      %v779 = vpack.c.bf16 %v777, %v775
      %v780 = vpack.c.bf16 %v778, %v776
      %v781 = vld [vmem:[%s4] sm:$0xf]
      %v782 = vld [vmem:[%s4 + $0x4] sm:$0xf]
      %v783 = vld [vmem:[%s4 + $0x8] sm:$0xf]
      %v784 = vld [vmem:[%s4 + $0xc] sm:$0xf]
      %v785 = vld [vmem:[%s4 + $0x10] sm:$0xf]
      %v786 = vld [vmem:[%s4 + $0x14] sm:$0xf]
      %v787 = vld [vmem:[%s4 + $0x18] sm:$0xf]
      %v788 = vld [vmem:[%s4 + $0x1c] sm:$0xf]
      %v789 = vld [vmem:[%s4 + $0x20] sm:$0xf]
      %v790 = vld [vmem:[%s4 + $0x24] sm:$0xf]
      %v791 = vld [vmem:[%s4 + $0x28] sm:$0xf]
      %v792 = vld [vmem:[%s4 + $0x2c] sm:$0xf]
      %v793 = vld [vmem:[%s4 + $0x30] sm:$0xf]
      %v794 = vld [vmem:[%s4 + $0x34] sm:$0xf]
      %v795 = vld [vmem:[%s4 + $0x38] sm:$0xf]
      %v796 = vld [vmem:[%s4 + $0x3c] sm:$0xf]
      %v797 = vld [vmem:[%s4 + $0x40] sm:$0xf]
      %v798 = vld [vmem:[%s4 + $0x44] sm:$0xf]
      %v799 = vld [vmem:[#allocation3] sm:$0xfe]
      %v800 = vld [vmem:[#allocation3 + $0x8] sm:$0xfe]
      %v801 = vld [vmem:[#allocation3 + $0x20] sm:$0x1]
      %v802 = vld [vmem:[#allocation3 + $0x28] sm:$0x1]
      %v803 = vpack.c.bf16 %v777, %v799
      %v804 = vpack.c.bf16 %v778, %v800
      %v805 = vpack.c.bf16 %v801, %v801
      %v806 = vpack.c.bf16 %v802, %v802
      %s807 = scalar_lea.vmem %s4, 72
      %v808 = vld [vmem:[%s807] sm:$0xf]
      %v809 = vld [vmem:[%s807 + $0x4] sm:$0xf]
      %v810 = vld [vmem:[%s807 + $0x8] sm:$0xf]
      %v811 = vld [vmem:[%s807 + $0xc] sm:$0xf]
      %v812 = vld [vmem:[%s807 + $0x10] sm:$0xf]
      %v813 = vld [vmem:[%s807 + $0x14] sm:$0xf]
      %v814 = vld [vmem:[%s807 + $0x18] sm:$0xf]
      %v815 = vld [vmem:[%s807 + $0x1c] sm:$0xf]
      %v816 = vld [vmem:[%s807 + $0x20] sm:$0xf]
      %v817 = vld [vmem:[%s807 + $0x24] sm:$0xf]
      %v818 = vld [vmem:[%s807 + $0x28] sm:$0xf]
      %v819 = vld [vmem:[%s807 + $0x2c] sm:$0xf]
      %v820 = vld [vmem:[%s807 + $0x30] sm:$0xf]
      %v821 = vld [vmem:[%s807 + $0x34] sm:$0xf]
      %v822 = vld [vmem:[%s807 + $0x38] sm:$0xf]
      %v823 = vld [vmem:[%s807 + $0x3c] sm:$0xf]
      %v824 = vld [vmem:[%s807 + $0x40] sm:$0xf]
      %v825 = vld [vmem:[%s807 + $0x44] sm:$0xf]
      %v827 = vshrl.u32 %v803, 16
      %v829 = vshll.u32 %v803, 16
      %v831 = vrot.slane %v829, 1
      %v832 = vor.u32 %v827, %v831
      %v834 = vshll.u32 %v805, 16
      %v836 = vrot.slane %v834, 1
      %v837 = vsel %vm368, %v832, %v836
      %v839 = vshrl.u32 %v804, 16
      %v841 = vshll.u32 %v804, 16
      %v843 = vrot.slane %v841, 1
      %v844 = vor.u32 %v839, %v843
      %v846 = vshll.u32 %v806, 16
      %v848 = vrot.slane %v846, 1
      %v849 = vsel %vm368, %v844, %v848
      %v869 = vunpack.c.l.b16 %v808
      %v870 = vunpack.c.l.b16 %v809
      %v871 = vunpack.c.l.b16 %v810
      %v872 = vunpack.c.l.b16 %v811
      %v873 = vunpack.c.l.b16 %v812
      %v874 = vunpack.c.l.b16 %v813
      %v875 = vunpack.c.l.b16 %v814
      %v876 = vunpack.c.l.b16 %v815
      %v877 = vunpack.c.l.b16 %v816
      %v878 = vunpack.c.l.b16 %v817
      %v879 = vunpack.c.l.b16 %v818
      %v880 = vunpack.c.l.b16 %v819
      %v881 = vunpack.c.l.b16 %v820
      %v882 = vunpack.c.l.b16 %v821
      %v883 = vunpack.c.l.b16 %v822
      %v884 = vunpack.c.l.b16 %v823
      %v885 = vunpack.c.l.b16 %v824
      %v886 = vunpack.c.l.b16 %v825
      %v887 = vpack.c.b16 %v870, %v869
      %v888 = vpack.c.b16 %v872, %v871
      %v889 = vpack.c.b16 %v874, %v873
      %v890 = vpack.c.b16 %v876, %v875
      %v891 = vpack.c.b16 %v878, %v877
      %v892 = vpack.c.b16 %v880, %v879
      %v893 = vpack.c.b16 %v882, %v881
      %v894 = vpack.c.b16 %v884, %v883
      %v895 = vpack.c.b16 %v886, %v885
      %v906 = vsel %vm283, %v849, 0
      %908 = vmatprep.subr.bf16.mxu0 0
      %909 = vmatpush1.bf16.msra.mxu0 %v887
      %910 = vmatprep.subr.bf16.mxu0 0
      %911 = vmatpush1.bf16.msra.mxu0 %v888
      %912 = vmatprep.subr.bf16.mxu0 0
      %913 = vmatpush1.bf16.msra.mxu0 %v889
      %914 = vmatprep.subr.bf16.mxu0 0
      %915 = vmatpush1.bf16.msra.mxu0 %v890
      %916 = vmatprep.subr.bf16.mxu0 0
      %917 = vmatpush1.bf16.msra.mxu0 %v891
      %918 = vmatprep.subr.bf16.mxu0 0
      %919 = vmatpush1.bf16.msra.mxu0 %v892
      %920 = vmatprep.subr.bf16.mxu0 0
      %921 = vmatpush1.bf16.msra.mxu0 %v893
      %922 = vmatprep.subr.bf16.mxu0 0
      %923 = vmatpush1.bf16.msra.mxu0 %v894
      %924 = vmatprep.subr.bf16.mxu0 0
      %925 = vmatpush1.bf16.msra.mxu0 %v895
      %926 = vmatprep.subr.bf16.mxu0 0
      %927 = vmatpush1.bf16.msra.mxu0 0
      %928 = vmatprep.subr.bf16.mxu0 0
      %929 = vmatpush1.bf16.msra.mxu0 0
      %930 = vmatprep.subr.bf16.mxu0 0
      %931 = vmatpush1.bf16.msra.mxu0 0
      %932 = vmatprep.subr.bf16.mxu0 0
      %933 = vmatpush1.bf16.msra.mxu0 0
      %934 = vmatprep.subr.bf16.mxu0 0
      %935 = vmatpush1.bf16.msra.mxu0 0
      %936 = vmatprep.subr.bf16.mxu0 0
      %937 = vmatpush1.bf16.msra.mxu0 0
      %938 = vmatprep.subr.bf16.mxu0 0
      %939 = vmatpush1.bf16.msra.mxu0 0
      %940 = vmatprep.mubr.bf16.mxu0 %v906
      %941 = vmatmul.mubr.bf16.gmra.mrb[0].mxu0 %v837
      %v942 = vpop.f32.mrb[0].mxu0
      %v943 = vadd.f32 0.0, %v942
      %v944 = vpop.f32.mrb[0].mxu0
      %v945 = vpop.f32.mrb[0].mxu0
      %v946 = vadd.f32 0.0, %v945
      %v947 = vpop.f32.mrb[0].mxu0
      %948 = vdwg.mxu0
      %v967 = vunpack.c.l.b16 %v781
      %v968 = vunpack.c.l.b16 %v782
      %v969 = vunpack.c.l.b16 %v783
      %v970 = vunpack.c.l.b16 %v784
      %v971 = vunpack.c.l.b16 %v785
      %v972 = vunpack.c.l.b16 %v786
      %v973 = vunpack.c.l.b16 %v787
      %v974 = vunpack.c.l.b16 %v788
      %v975 = vunpack.c.l.b16 %v789
      %v976 = vunpack.c.l.b16 %v790
      %v977 = vunpack.c.l.b16 %v791
      %v978 = vunpack.c.l.b16 %v792
      %v979 = vunpack.c.l.b16 %v793
      %v980 = vunpack.c.l.b16 %v794
      %v981 = vunpack.c.l.b16 %v795
      %v982 = vunpack.c.l.b16 %v796
      %v983 = vunpack.c.l.b16 %v797
      %v984 = vunpack.c.l.b16 %v798
      %v985 = vpack.c.b16 %v968, %v967
      %v986 = vpack.c.b16 %v970, %v969
      %v987 = vpack.c.b16 %v972, %v971
      %v988 = vpack.c.b16 %v974, %v973
      %v989 = vpack.c.b16 %v976, %v975
      %v990 = vpack.c.b16 %v978, %v977
      %v991 = vpack.c.b16 %v980, %v979
      %v992 = vpack.c.b16 %v982, %v981
      %v993 = vpack.c.b16 %v984, %v983
      %v1004 = vsel %vm283, %v780, 0
      %1006 = vmatprep.subr.bf16.mxu0 0
      %1007 = vmatpush1.bf16.msra.mxu0 %v985
      %1008 = vmatprep.subr.bf16.mxu0 0
      %1009 = vmatpush1.bf16.msra.mxu0 %v986
      %1010 = vmatprep.subr.bf16.mxu0 0
      %1011 = vmatpush1.bf16.msra.mxu0 %v987
      %1012 = vmatprep.subr.bf16.mxu0 0
      %1013 = vmatpush1.bf16.msra.mxu0 %v988
      %1014 = vmatprep.subr.bf16.mxu0 0
      %1015 = vmatpush1.bf16.msra.mxu0 %v989
      %1016 = vmatprep.subr.bf16.mxu0 0
      %1017 = vmatpush1.bf16.msra.mxu0 %v990
      %1018 = vmatprep.subr.bf16.mxu0 0
      %1019 = vmatpush1.bf16.msra.mxu0 %v991
      %1020 = vmatprep.subr.bf16.mxu0 0
      %1021 = vmatpush1.bf16.msra.mxu0 %v992
      %1022 = vmatprep.subr.bf16.mxu0 0
      %1023 = vmatpush1.bf16.msra.mxu0 %v993
      %1024 = vmatprep.subr.bf16.mxu0 0
      %1025 = vmatpush1.bf16.msra.mxu0 0
      %1026 = vmatprep.subr.bf16.mxu0 0
      %1027 = vmatpush1.bf16.msra.mxu0 0
      %1028 = vmatprep.subr.bf16.mxu0 0
      %1029 = vmatpush1.bf16.msra.mxu0 0
      %1030 = vmatprep.subr.bf16.mxu0 0
      %1031 = vmatpush1.bf16.msra.mxu0 0
      %1032 = vmatprep.subr.bf16.mxu0 0
      %1033 = vmatpush1.bf16.msra.mxu0 0
      %1034 = vmatprep.subr.bf16.mxu0 0
      %1035 = vmatpush1.bf16.msra.mxu0 0
      %1036 = vmatprep.subr.bf16.mxu0 0
      %1037 = vmatpush1.bf16.msra.mxu0 0
      %1038 = vmatprep.mubr.bf16.mxu0 %v1004
      %1039 = vmatmul.mubr.bf16.gmra.mrb[0].mxu0 %v779
      %v1040 = vpop.f32.mrb[0].mxu0
      %v1041 = vadd.f32 %v943, %v1040
      %v1042 = vpop.f32.mrb[0].mxu0
      %v1043 = vpop.f32.mrb[0].mxu0
      %v1044 = vadd.f32 %v946, %v1043
      %v1045 = vpop.f32.mrb[0].mxu0
      %1046 = vdwg.mxu0
      %v1047 = vld [vmem:[#allocation3] sm:$0xfc]
      %v1048 = vld [vmem:[#allocation3 + $0x8] sm:$0xfc]
      %v1049 = vld [vmem:[#allocation3 + $0x20] sm:$0x3]
      %v1050 = vld [vmem:[#allocation3 + $0x28] sm:$0x3]
      %v1051 = vpack.c.bf16 %v777, %v1047
      %v1052 = vpack.c.bf16 %v778, %v1048
      %v1053 = vpack.c.bf16 %v1049, %v1049
      %v1054 = vpack.c.bf16 %v1050, %v1050
      %s1055 = scalar_lea.vmem %s4, 144
      %v1056 = vld [vmem:[%s1055] sm:$0xf]
      %v1057 = vld [vmem:[%s1055 + $0x4] sm:$0xf]
      %v1058 = vld [vmem:[%s1055 + $0x8] sm:$0xf]
      %v1059 = vld [vmem:[%s1055 + $0xc] sm:$0xf]
      %v1060 = vld [vmem:[%s1055 + $0x10] sm:$0xf]
      %v1061 = vld [vmem:[%s1055 + $0x14] sm:$0xf]
      %v1062 = vld [vmem:[%s1055 + $0x18] sm:$0xf]
      %v1063 = vld [vmem:[%s1055 + $0x1c] sm:$0xf]
      %v1064 = vld [vmem:[%s1055 + $0x20] sm:$0xf]
      %v1065 = vld [vmem:[%s1055 + $0x24] sm:$0xf]
      %v1066 = vld [vmem:[%s1055 + $0x28] sm:$0xf]
      %v1067 = vld [vmem:[%s1055 + $0x2c] sm:$0xf]
      %v1068 = vld [vmem:[%s1055 + $0x30] sm:$0xf]
      %v1069 = vld [vmem:[%s1055 + $0x34] sm:$0xf]
      %v1070 = vld [vmem:[%s1055 + $0x38] sm:$0xf]
      %v1071 = vld [vmem:[%s1055 + $0x3c] sm:$0xf]
      %v1072 = vld [vmem:[%s1055 + $0x40] sm:$0xf]
      %v1073 = vld [vmem:[%s1055 + $0x44] sm:$0xf]
      %v1078 = vrot.slane %v1051, 1
      %v1079 = vrot.slane %v1053, 1
      %v1080 = vsel %vm621, %v1078, %v1079
      %v1081 = vrot.slane %v1052, 1
      %v1082 = vrot.slane %v1054, 1
      %v1083 = vsel %vm621, %v1081, %v1082
      %v1103 = vunpack.c.l.b16 %v1056
      %v1104 = vunpack.c.l.b16 %v1057
      %v1105 = vunpack.c.l.b16 %v1058
      %v1106 = vunpack.c.l.b16 %v1059
      %v1107 = vunpack.c.l.b16 %v1060
      %v1108 = vunpack.c.l.b16 %v1061
      %v1109 = vunpack.c.l.b16 %v1062
      %v1110 = vunpack.c.l.b16 %v1063
      %v1111 = vunpack.c.l.b16 %v1064
      %v1112 = vunpack.c.l.b16 %v1065
      %v1113 = vunpack.c.l.b16 %v1066
      %v1114 = vunpack.c.l.b16 %v1067
      %v1115 = vunpack.c.l.b16 %v1068
      %v1116 = vunpack.c.l.b16 %v1069
      %v1117 = vunpack.c.l.b16 %v1070
      %v1118 = vunpack.c.l.b16 %v1071
      %v1119 = vunpack.c.l.b16 %v1072
      %v1120 = vunpack.c.l.b16 %v1073
      %v1121 = vpack.c.b16 %v1104, %v1103
      %v1122 = vpack.c.b16 %v1106, %v1105
      %v1123 = vpack.c.b16 %v1108, %v1107
      %v1124 = vpack.c.b16 %v1110, %v1109
      %v1125 = vpack.c.b16 %v1112, %v1111
      %v1126 = vpack.c.b16 %v1114, %v1113
      %v1127 = vpack.c.b16 %v1116, %v1115
      %v1128 = vpack.c.b16 %v1118, %v1117
      %v1129 = vpack.c.b16 %v1120, %v1119
      %v1140 = vsel %vm283, %v1083, 0
      %1142 = vmatprep.subr.bf16.mxu0 0
      %1143 = vmatpush1.bf16.msra.mxu0 %v1121
      %1144 = vmatprep.subr.bf16.mxu0 0
      %1145 = vmatpush1.bf16.msra.mxu0 %v1122
      %1146 = vmatprep.subr.bf16.mxu0 0
      %1147 = vmatpush1.bf16.msra.mxu0 %v1123
      %1148 = vmatprep.subr.bf16.mxu0 0
      %1149 = vmatpush1.bf16.msra.mxu0 %v1124
      %1150 = vmatprep.subr.bf16.mxu0 0
      %1151 = vmatpush1.bf16.msra.mxu0 %v1125
      %1152 = vmatprep.subr.bf16.mxu0 0
      %1153 = vmatpush1.bf16.msra.mxu0 %v1126
      %1154 = vmatprep.subr.bf16.mxu0 0
      %1155 = vmatpush1.bf16.msra.mxu0 %v1127
      %1156 = vmatprep.subr.bf16.mxu0 0
      %1157 = vmatpush1.bf16.msra.mxu0 %v1128
      %1158 = vmatprep.subr.bf16.mxu0 0
      %1159 = vmatpush1.bf16.msra.mxu0 %v1129
      %1160 = vmatprep.subr.bf16.mxu0 0
      %1161 = vmatpush1.bf16.msra.mxu0 0
      %1162 = vmatprep.subr.bf16.mxu0 0
      %1163 = vmatpush1.bf16.msra.mxu0 0
      %1164 = vmatprep.subr.bf16.mxu0 0
      %1165 = vmatpush1.bf16.msra.mxu0 0
      %1166 = vmatprep.subr.bf16.mxu0 0
      %1167 = vmatpush1.bf16.msra.mxu0 0
      %1168 = vmatprep.subr.bf16.mxu0 0
      %1169 = vmatpush1.bf16.msra.mxu0 0
      %1170 = vmatprep.subr.bf16.mxu0 0
      %1171 = vmatpush1.bf16.msra.mxu0 0
      %1172 = vmatprep.subr.bf16.mxu0 0
      %1173 = vmatpush1.bf16.msra.mxu0 0
      %1174 = vmatprep.mubr.bf16.mxu0 %v1140
      %1175 = vmatmul.mubr.bf16.gmra.mrb[0].mxu0 %v1080
      %v1176 = vpop.f32.mrb[0].mxu0
      %v1177 = vadd.f32 0.0, %v1176
      %v1178 = vpop.f32.mrb[0].mxu0
      %v1179 = vpop.f32.mrb[0].mxu0
      %v1180 = vadd.f32 0.0, %v1179
      %v1181 = vpop.f32.mrb[0].mxu0
      %1182 = vdwg.mxu0
      %v1183 = vadd.f32 %v1041, %v1177
      %v1184 = vadd.f32 %v1044, %v1180
      %v1185 = vld [vmem:[%s5] sm:$0x1]
      %v1187 = vlaneseq
      %v1188 = vshrl.u32 %v1187, 7
      %v1189 = vsub.s32 0, %v1188
      %v1190 = vrot.slane %v1185, %v1189
      %v1192 = vmul.f32 %v1183, %v1190
      %v1193 = vmul.f32 %v1184, %v1190
      %v1194 = vld [vmem:[%s6] sm:$0x1]
      %v1196 = vlaneseq
      %v1197 = vshrl.u32 %v1196, 7
      %v1198 = vsub.s32 0, %v1197
      %v1199 = vrot.slane %v1194, %v1198
      %v1201 = vadd.f32 %v1192, %v1199
      %v1202 = vadd.f32 %v1193, %v1199
      %v1203 = vadd.f32 %v1201, %v280
      %v1204 = vadd.f32 %v1202, %v281
      %v1205 = vmax.f32 %v1203, 0.0
      %v1206 = vmax.f32 %v1204, 0.0
      %1207 = vst [vmem:[%s278] sm:$0xff] %v1205
      %1208 = vst [vmem:[%s278 + $0x8] sm:$0xff] %v1206
      %p1209 = scmp.lt.s32.totalorder %s18, 1
      %s1210 = scalar_select %p1209, %s18, 1
      %s1211 = smul.addr %s1210, 2
      %s1212 = smul.addr %s1211, 8
      %s1213 = scalar_lea.vmem %s7, %s1212
      // Predicated region
      $region49: #{basic_block_forward.1} parent=47 // pred_check
        %p1214 = pneg %p188
      $region50: #{basic_block_forward.1} parent=47 // pred_check_branch
        %1216 = sbr.rel (%p1214) target = $region52
      $region51: #{basic_block_forward.1} parent=47 // pred_region
        _
      $region52: #{basic_block_forward.1} parent=47 // pred_fallthru
        _
    $region48: #{basic_block_forward.1} parent=5 // pred_fallthru
      _
    %p1217 = scmp.le.s32.totalorder 2, %s13
    // Predicated region
    $region53: #{basic_block_forward.1} parent=5 // pred_check
      %p1218 = pneg %p1217
    $region54: #{basic_block_forward.1} parent=5 // pred_check_branch
      %1220 = sbr.rel (%p1218) target = $region56
    $region55: #{basic_block_forward.1} parent=5 // pred_region
      %s1221 = ssub.s32 %s13, 2
      // Predicated region
      $region57: #{basic_block_forward.1} parent=55 // pred_check
        %p1222 = pneg %p194
      $region58: #{basic_block_forward.1} parent=55 // pred_check_branch
        %1224 = sbr.rel (%p1222) target = $region60
      $region59: #{basic_block_forward.1} parent=55 // pred_region
        %p1225 = scmp.lt.s32.totalorder %s19, 1
        %s1226 = scalar_select %p1225, %s19, 1
        %s1227 = smul.addr %s1226, 2
        %s1228 = smul.addr %s1227, 8
        %s1229 = scalar_lea.vmem %s7, %s1228
      $region60: #{basic_block_forward.1} parent=55 // pred_fallthru
        _
    $region56: #{basic_block_forward.1} parent=5 // pred_fallthru
      _
  $region6: #{basic_block_forward.1} parent=0 // loop_footer
    %s17 = sadd.s32 1, %s13
  $region7: #{basic_block_forward.1} parent=0 // loop_footer_branch
    %12 = sbr.rel target = $region3
  $region8: #{basic_block_forward.1} parent=0 // loop_exit
    _

</llo_original>
